<compile_context>
chip_gen: v5e
topology: v5e:2x2
jax: 0.10.0
libtpu: 0.0.40
codegen_flags: <defaults>
</compile_context>

<pallas_src>
import functools

import numpy as np
import jax
import jax.numpy as jnp
from jax.experimental import pallas as pl
from jax.experimental.pallas import tpu as pltpu


def _round_up(x, m):
    return (x + m - 1) // m * m


# ----------------------------------------------------------------------------------
# Pallas kernels
# ----------------------------------------------------------------------------------
def _gemm_kernel(x_ref, w_ref, b_ref, o_ref, acc_ref, *, relu):
    """bf16 GEMM with f32 accumulation and fused bias (+ReLU) epilogue."""
    @pl.when(pl.program_id(2) == 0)
    def _():
        acc_ref[...] = jnp.zeros_like(acc_ref)

    acc_ref[...] += jnp.dot(x_ref[...], w_ref[...],
                            preferred_element_type=jnp.float32)

    @pl.when(pl.program_id(2) == pl.num_programs(2) - 1)
    def _():
        y = acc_ref[...] + b_ref[...]
        if relu:
            y = jnp.maximum(y, 0.0)
        o_ref[...] = y.astype(o_ref.dtype)


def _gemm_res_kernel(x_ref, w_ref, b_ref, r_ref, o_ref, acc_ref):
    """Same GEMM, with the bottleneck residual add + ReLU fused into the epilogue."""
    @pl.when(pl.program_id(2) == 0)
    def _():
        acc_ref[...] = jnp.zeros_like(acc_ref)

    acc_ref[...] += jnp.dot(x_ref[...], w_ref[...],
                            preferred_element_type=jnp.float32)

    @pl.when(pl.program_id(2) == pl.num_programs(2) - 1)
    def _():
        y = acc_ref[...] + b_ref[...] + r_ref[...].astype(jnp.float32)
        o_ref[...] = jnp.maximum(y, 0.0).astype(o_ref.dtype)


def _conv3x3_kernel(x_ref, w_ref, b_ref, o_ref, acc_ref, *, taps, m_ext, relu):
    """Fused-im2col 3x3 stride-1 conv: the padded input block (flattened spatially)
    is read once per Cin tile; the 9 taps are shifted VMEM slices accumulated on MXU."""
    k = pl.program_id(2)

    @pl.when(k == 0)
    def _():
        acc_ref[...] = jnp.zeros_like(acc_ref)

    for t, off in enumerate(taps):
        xt = x_ref[off:off + m_ext, :]
        acc_ref[...] += jnp.dot(xt, w_ref[t], preferred_element_type=jnp.float32)

    @pl.when(k == pl.num_programs(2) - 1)
    def _():
        y = acc_ref[...] + b_ref[...]
        if relu:
            y = jnp.maximum(y, 0.0)
        o_ref[...] = y.astype(o_ref.dtype)


# ----------------------------------------------------------------------------------
# GEMM builder + conv wrappers
# ----------------------------------------------------------------------------------
def _pick_tk(K):
    if K % 128 != 0:
        return K                       # single full-K block (K == full array dim)
    g = K // 128
    for d in range(min(g, 16), 0, -1):  # cap tk at 2048
        if g % d == 0:
            return 128 * d
    return 128


def _gemm_build(x2d, w, b, relu, residual=None):
    """out = act(x2d @ w + b [+ residual]); x2d:(M,K) bf16, w:(K,Np) bf16, b:(1,Np) f32."""
    M, K = x2d.shape
    Np = w.shape[1]
    if M >= 256:
        tm = 256
    elif M >= 128:
        tm = 128
    else:
        tm = _round_up(max(M, 8), 16)
    Mp = _round_up(M, tm)
    tn = 256 if (Np % 256 == 0 and Mp // tm >= 2) else 128
    tk = _pick_tk(K)

    xp = x2d if Mp == M else jnp.pad(x2d, ((0, Mp - M), (0, 0)))
    args = [xp, w, b]
    in_specs = [
        pl.BlockSpec((tm, tk), lambda i, j, k: (i, k)),
        pl.BlockSpec((tk, tn), lambda i, j, k: (k, j)),
        pl.BlockSpec((1, tn), lambda i, j, k: (0, j)),
    ]
    if residual is not None:
        rp = residual
        if rp.shape[1] != Np:
            rp = jnp.pad(rp, ((0, 0), (0, Np - rp.shape[1])))
        if Mp != M:
            rp = jnp.pad(rp, ((0, Mp - M), (0, 0)))
        args.append(rp)
        in_specs.append(pl.BlockSpec((tm, tn), lambda i, j, k: (i, j)))
        kernel = _gemm_res_kernel
    else:
        kernel = functools.partial(_gemm_kernel, relu=relu)

    out = pl.pallas_call(
        kernel,
        out_shape=jax.ShapeDtypeStruct((Mp, Np), jnp.bfloat16),
        grid_spec=pltpu.PrefetchScalarGridSpec(
            num_scalar_prefetch=0,
            grid=(Mp // tm, Np // tn, K // tk),
            in_specs=in_specs,
            out_specs=pl.BlockSpec((tm, tn), lambda i, j, k: (i, j)),
            scratch_shapes=[pltpu.VMEM((tm, tn), jnp.float32)],
        ),
        compiler_params=pltpu.CompilerParams(
            dimension_semantics=("parallel", "parallel", "arbitrary")),
    )(*args)
    return out


@functools.partial(jax.jit, static_argnames=("stride", "relu", "cout"))
def conv1x1(x, w, b, *, stride, relu, cout):
    if stride > 1:
        x = x[:, ::stride, ::stride, :]
    n, h, wd, c = x.shape
    out = _gemm_build(x.reshape(n * h * wd, c), w, b, relu)
    return out[:n * h * wd, :cout].reshape(n, h, wd, cout)


@functools.partial(jax.jit, static_argnames=("cout",))
def conv1x1_residual(x, w, b, res, *, cout):
    n, h, wd, c = x.shape
    x2 = x.reshape(n * h * wd, c)
    r2 = res.reshape(n * h * wd, res.shape[-1])
    out = _gemm_build(x2, w, b, True, residual=r2)
    return out[:n * h * wd, :cout].reshape(n, h, wd, cout)


@functools.partial(jax.jit, static_argnames=("dilation", "relu", "cout"))
def conv3x3_fused(x, w9, b, *, dilation, relu, cout):
    """3x3 stride-1 conv with padding==dilation.  Input read once; taps fused in-kernel.
    Works on the flattened padded image so every tap is a constant row offset."""
    n, h, wd, c = x.shape
    p = dilation
    hp, wp = h + 2 * p, wd + 2 * p
    m_ext = _round_up(h * wp, 8)                 # extended output rows (garbage cols dropped)
    L = _round_up(2 * p * wp + 2 * p + m_ext, 8)  # flattened padded input length (+ safety tail)
    coutp = w9.shape[2]
    tcin = 512 if c % 512 == 0 else 256 if c % 256 == 0 else 128 if c % 128 == 0 else c
    tcout = 256 if coutp % 256 == 0 else 128
    taps = tuple(ki * dilation * wp + kj * dilation
                 for ki in range(3) for kj in range(3))

    xp = jnp.pad(x, ((0, 0), (p, p), (p, p), (0, 0))).reshape(n, hp * wp, c)
    if L > hp * wp:
        xp = jnp.pad(xp, ((0, 0), (0, L - hp * wp), (0, 0)))

    out = pl.pallas_call(
        functools.partial(_conv3x3_kernel, taps=taps, m_ext=m_ext, relu=relu),
        out_shape=jax.ShapeDtypeStruct((n, m_ext, coutp), jnp.bfloat16),
        grid_spec=pltpu.PrefetchScalarGridSpec(
            num_scalar_prefetch=0,
            grid=(n, coutp // tcout, c // tcin),
            in_specs=[
                pl.BlockSpec((None, L, tcin), lambda bi, j, k: (bi, 0, k)),
                pl.BlockSpec((9, tcin, tcout), lambda bi, j, k: (0, k, j)),
                pl.BlockSpec((1, tcout), lambda bi, j, k: (0, j)),
            ],
            out_specs=pl.BlockSpec((None, m_ext, tcout), lambda bi, j, k: (bi, 0, j)),
            scratch_shapes=[pltpu.VMEM((m_ext, tcout), jnp.float32)],
        ),
        compiler_params=pltpu.CompilerParams(
            dimension_semantics=("parallel", "parallel", "arbitrary")),
    )(xp, w9, b)
    out = out[:, :h * wp, :].reshape(n, h, wp, coutp)[:, :, :wd, :cout]
    return out


@functools.partial(jax.jit,
                   static_argnames=("kh", "kw", "stride", "dilation", "padding", "relu", "cout"))
def conv_im2col(x, w, b, *, kh, kw, stride, dilation, padding, relu, cout):
    """Fallback path (7x7 stem, 3x3 stride-2): bf16 NHWC im2col + Pallas GEMM."""
    n, h, wd, c = x.shape
    ho = (h + 2 * padding - dilation * (kh - 1) - 1) // stride + 1
    wo = (wd + 2 * padding - dilation * (kw - 1) - 1) // stride + 1
    xp = jnp.pad(x, ((0, 0), (padding, padding), (padding, padding), (0, 0)))
    cols = []
    for ki in range(kh):
        for kj in range(kw):
            h0, w0 = ki * dilation, kj * dilation
            cols.append(xp[:, h0:h0 + stride * (ho - 1) + 1:stride,
                           w0:w0 + stride * (wo - 1) + 1:stride, :])
    col = jnp.concatenate(cols, axis=-1).reshape(n * ho * wo, kh * kw * c)
    out = _gemm_build(col, w, b, relu)
    return out[:n * ho * wo, :cout].reshape(n, ho, wo, cout)


def apply_conv(x, p, residual=None):
    if residual is not None:
        return conv1x1_residual(x, p["w"], p["b"], residual, cout=p["cout"])
    if p["kind"] == "1x1":
        return conv1x1(x, p["w"], p["b"], stride=p["stride"], relu=p["relu"], cout=p["cout"])
    if p["kind"] == "3x3f":
        n, h, wd, c = x.shape
        d = p["dilation"]
        wp_ = wd + 2 * d
        m_ext = _round_up(h * wp_, 8)
        coutp = p["w"].shape[-1]
        tcin = 512 if c % 512 == 0 else 256 if c % 256 == 0 else 128 if c % 128 == 0 else c
        tcout = 256 if coutp % 256 == 0 else 128
        L = _round_up(2 * d * wp_ + 2 * d + m_ext, 8)
        vmem_est = (2 * (2 * L * tcin + 2 * 9 * tcin * tcout + 2 * m_ext * tcout)
                    + 4 * m_ext * tcout)
        if vmem_est <= 24 * 1024 * 1024:
            return conv3x3_fused(x, p["w"], p["b"], dilation=d, relu=p["relu"], cout=p["cout"])
        # TODO(synk): very large spatial 3x3 convs fall back to materialized im2col; a tiled
        # manual-DMA fused conv would keep the single-read property at any spatial size.
        return conv_im2col(x, p["w"].reshape(9 * c, coutp), p["b"], kh=3, kw=3, stride=1,
                           dilation=d, padding=d, relu=p["relu"], cout=p["cout"])
    return conv_im2col(x, p["w"], p["b"], kh=p["k"], kw=p["k"], stride=p["stride"],
                       dilation=p["dilation"], padding=p["padding"],
                       relu=p["relu"], cout=p["cout"])


# ----------------------------------------------------------------------------------
# Plain-JAX glue (pooling, bilinear resize) on NHWC
# ----------------------------------------------------------------------------------
@jax.jit
def maxpool_3x3_s2_p1(x):
    n, h, w, c = x.shape
    ho = (h + 2 - 3) // 2 + 1
    wo = (w + 2 - 3) // 2 + 1
    xp = jnp.pad(x, ((0, 0), (1, 1), (1, 1), (0, 0)), constant_values=-jnp.inf)
    out = None
    for ki in range(3):
        for kj in range(3):
            patch = xp[:, ki:ki + 2 * (ho - 1) + 1:2, kj:kj + 2 * (wo - 1) + 1:2, :]
            out = patch if out is None else jnp.maximum(out, patch)
    return out


@functools.partial(jax.jit, static_argnames=("out_h", "out_w"))
def bilinear_resize_nhwc(x, *, out_h, out_w):
    """F.interpolate(mode='bilinear', align_corners=False) on NHWC."""
    n, h, w, c = x.shape
    if (h, w) == (out_h, out_w):
        return x
    xf = x.astype(jnp.float32)
    sy = jnp.clip((jnp.arange(out_h, dtype=jnp.float32) + 0.5) * (h / out_h) - 0.5, 0.0, h - 1)
    sx = jnp.clip((jnp.arange(out_w, dtype=jnp.float32) + 0.5) * (w / out_w) - 0.5, 0.0, w - 1)
    y0 = jnp.floor(sy).astype(jnp.int32)
    y1 = jnp.minimum(y0 + 1, h - 1)
    x0 = jnp.floor(sx).astype(jnp.int32)
    x1 = jnp.minimum(x0 + 1, w - 1)
    wy = (sy - y0.astype(jnp.float32))[None, :, None, None]
    wx = (sx - x0.astype(jnp.float32))[None, None, :, None]
    r0 = xf[:, y0, :, :]
    r1 = xf[:, y1, :, :]
    top = r0[:, :, x0, :] * (1.0 - wx) + r0[:, :, x1, :] * wx
    bot = r1[:, :, x0, :] * (1.0 - wx) + r1[:, :, x1, :] * wx
    return (top * (1.0 - wy) + bot * wy).astype(x.dtype)


# ----------------------------------------------------------------------------------
# Deterministic parameter construction (ResNet50 backbone + ASPP + decoder)
# ----------------------------------------------------------------------------------
class ParamGen:
    def __init__(self, seed=0):
        self._base = jax.random.PRNGKey(seed)
        self._n = 0

    def _next(self):
        k = jax.random.fold_in(self._base, self._n)
        self._n += 1
        return k

    def conv_w(self, cout, cin, kh, kw):
        fan_in = cin * kh * kw
        return (jax.random.normal(self._next(), (cout, cin, kh, kw), jnp.float32)
                * np.float32(np.sqrt(2.0 / fan_in)))

    def vec(self, n, scale=0.01):
        return jax.random.normal(self._next(), (n,), jnp.float32) * scale


def make_cbr(pg, cin, cout, k, stride=1, dilation=1, padding=0,
             relu=True, use_bn=True, conv_bias=False):
    w = pg.conv_w(cout, cin, k, k)
    if use_bn:
        # Eval-mode BatchNorm with default init (gamma=1, beta=0, mean=0, var=1, eps=1e-5)
        scale = jnp.full((cout,), 1.0 / np.sqrt(1.0 + 1e-5), jnp.float32)
        bias = jnp.zeros((cout,), jnp.float32)
    else:
        scale = jnp.ones((cout,), jnp.float32)
        bias = pg.vec(cout) if conv_bias else jnp.zeros((cout,), jnp.float32)
    wf = w * scale[:, None, None, None]                 # fold BN scale into weights (f32)
    wt = jnp.transpose(wf, (2, 3, 1, 0))                # (k, k, cin, cout), tap-major K order
    coutp = _round_up(cout, 128)
    if k == 1:
        kind, w_arr = "1x1", wt.reshape(cin, cout)
    elif k == 3 and stride == 1 and padding == dilation:
        kind, w_arr = "3x3f", wt.reshape(9, cin, cout)
    else:
        kind, w_arr = "im2col", wt.reshape(k * k * cin, cout)
    pad = [(0, 0)] * (w_arr.ndim - 1) + [(0, coutp - cout)]
    w_arr = jnp.pad(w_arr, pad).astype(jnp.bfloat16)    # pre-padded, pre-cast once
    b_arr = jnp.pad(bias, (0, coutp - cout)).reshape(1, coutp)
    return dict(w=w_arr, b=b_arr, kind=kind, k=k, stride=stride, dilation=dilation,
                padding=padding, relu=relu, cout=cout)


def make_bottleneck(pg, inplanes, planes, stride, dilation, need_ds):
    return {
        "conv1": make_cbr(pg, inplanes, planes, 1),
        "conv2": make_cbr(pg, planes, planes, 3, stride=stride,
                          dilation=dilation, padding=dilation),
        "conv3": make_cbr(pg, planes, planes * 4, 1, relu=False),
        "downsample": (make_cbr(pg, inplanes, planes * 4, 1, stride=stride, relu=False)
                       if need_ds else None),
    }


def make_layer(pg, inplanes, planes, blocks, stride, dilate, dilation):
    previous_dilation = dilation
    if dilate:
        dilation *= stride
        stride = 1
    need_ds = (stride != 1) or (inplanes != planes * 4)
    layer = [make_bottleneck(pg, inplanes, planes, stride, previous_dilation, need_ds)]
    inplanes = planes * 4
    for _ in range(1, blocks):
        layer.append(make_bottleneck(pg, inplanes, planes, 1, dilation, False))
    return layer, inplanes, dilation


def build_params(pg, in_channels=3, num_classes=1, output_stride=16):
    assert output_stride in (8, 16)
    p = {}
    p["conv1"] = make_cbr(pg, in_channels, 64, 7, stride=2, padding=3)

    inplanes, dilation = 64, 1
    cfg = [(64, 3, 1, False),
           (128, 4, 2, False),
           (256, 6, 2, output_stride == 8),
           (512, 3, 2, True)]
    layers = []
    for planes, blocks, stride, dilate in cfg:
        layer, inplanes, dilation = make_layer(pg, inplanes, planes, blocks, stride, dilate, dilation)
        layers.append(layer)
    p["layers"] = layers

    rates = [6, 12, 18] if output_stride == 16 else [12, 24, 36]
    p["aspp_b0"] = make_cbr(pg, 2048, 256, 1)
    p["aspp_atrous"] = [make_cbr(pg, 2048, 256, 3, dilation=r, padding=r) for r in rates]
    p["aspp_pool"] = make_cbr(pg, 2048, 256, 1)
    p["aspp_project"] = make_cbr(pg, 5 * 256, 256, 1)

    p["dec_low"] = make_cbr(pg, 256, 48, 1)
    p["dec_fuse1"] = make_cbr(pg, 256 + 48, 256, 3, padding=1)
    p["dec_fuse2"] = make_cbr(pg, 256, 256, 3, padding=1)
    p["classifier"] = make_cbr(pg, 256, num_classes, 1, relu=False,
                               use_bn=False, conv_bias=True)
    return p


# ----------------------------------------------------------------------------------
# Forward pass
# ----------------------------------------------------------------------------------
def run_layer(x, layer):
    for blk in layer:
        identity = apply_conv(x, blk["downsample"]) if blk["downsample"] is not None else x
        out = apply_conv(x, blk["conv1"])
        out = apply_conv(out, blk["conv2"])
        x = apply_conv(out, blk["conv3"], residual=identity)   # residual add+ReLU fused
    return x


def deeplabv3plus_forward(params, x_nchw):
    x = jnp.transpose(x_nchw, (0, 2, 3, 1)).astype(jnp.bfloat16)   # NCHW -> NHWC bf16
    in_h, in_w = x.shape[1], x.shape[2]

    # Backbone stem
    x = apply_conv(x, params["conv1"])
    x = maxpool_3x3_s2_p1(x)

    # ResNet50 layers
    low = run_layer(x, params["layers"][0])           # low-level features (256 ch)
    x = run_layer(low, params["layers"][1])
    x = run_layer(x, params["layers"][2])
    high = run_layer(x, params["layers"][3])          # high-level features (2048 ch)

    # ASPP
    branches = [apply_conv(high, params["aspp_b0"])]
    for p in params["aspp_atrous"]:
        branches.append(apply_conv(high, p))
    pooled = jnp.mean(high.astype(jnp.float32), axis=(1, 2), keepdims=True).astype(jnp.bfloat16)
    pooled = apply_conv(pooled, params["aspp_pool"])
    pooled = bilinear_resize_nhwc(pooled, out_h=high.shape[1], out_w=high.shape[2])
    branches.append(pooled)
    x = jnp.concatenate(branches, axis=-1)
    x = apply_conv(x, params["aspp_project"])         # Dropout(0.1) = identity (eval)

    # Decoder
    x = bilinear_resize_nhwc(x, out_h=low.shape[1], out_w=low.shape[2])
    lowf = apply_conv(low, params["dec_low"])
    x = jnp.concatenate([x, lowf], axis=-1)
    x = apply_conv(x, params["dec_fuse1"])            # Dropout(0.5) = identity (eval)
    x = apply_conv(x, params["dec_fuse2"])            # Dropout(0.1) = identity (eval)
    x = bilinear_resize_nhwc(x, out_h=in_h, out_w=in_w)
    logits = apply_conv(x, params["classifier"])
    return jnp.transpose(logits, (0, 3, 1, 2)).astype(jnp.float32)   # back to NCHW, f32


if __name__ == "__main__":
    pg = ParamGen(seed=0)
    params = build_params(pg, in_channels=3, num_classes=1, output_stride=16)

    key = jax.random.PRNGKey(0)
    x = jax.random.normal(key, (2, 3, 32, 32), jnp.float32)

    logits = deeplabv3plus_forward(params, x)
    logits = jax.block_until_ready(logits)

    assert logits.shape == (2, 1, 32, 32), logits.shape
    assert bool(jnp.all(jnp.isfinite(logits)))
    print("KERNEL_OK")
</pallas_src>

<mosaic_0001>
module attributes {stable_mosaic.version = 11 : i64} {
  func.func @_gemm_kernel(%arg0: i32, %arg1: i32, %arg2: i32, %arg3: memref<256x147xbf16, #tpu.memory_space<vmem>>, %arg4: memref<147x128xbf16, #tpu.memory_space<vmem>>, %arg5: memref<1x128xf32, #tpu.memory_space<vmem>>, %arg6: memref<256x128xbf16, #tpu.memory_space<vmem>>, %arg7: memref<256x128xf32, #tpu.memory_space<vmem>>) attributes {dimension_semantics = [#tpu.dimension_semantics<parallel>, #tpu.dimension_semantics<parallel>, #tpu.dimension_semantics<arbitrary>], iteration_bounds = array<i64: 2, 1, 1>, scalar_prefetch = 0 : i64, scratch_operands = 1 : i64, tpu.core_type = #tpu.core_type<tc>, window_params = [{transform_indices = @transform_0, window_bounds = array<i64: 256, 147>}, {transform_indices = @transform_1, window_bounds = array<i64: 147, 128>}, {transform_indices = @transform_2, window_bounds = array<i64: 1, 128>}, {transform_indices = @transform_3, window_bounds = array<i64: 256, 128>}]} {
    %c0_i32 = arith.constant 0 : i32
    %0 = arith.cmpi eq, %arg2, %c0_i32 : i32
    %1 = arith.extui %0 : i1 to i32
    %c0_i32_0 = arith.constant 0 : i32
    %2 = arith.cmpi ne, %1, %c0_i32_0 : i32
    scf.if %2 {
      %cst_10 = arith.constant 0.000000e+00 : f32
      %12 = vector.broadcast %cst_10 : f32 to vector<256x128xf32>
      %c0_11 = arith.constant 0 : index
      %c0_12 = arith.constant 0 : index
      %13 = vector.load %arg7[%c0_11, %c0_12] : memref<256x128xf32, #tpu.memory_space<vmem>>, vector<256x128xf32>
      tpu.vector_store %arg7[%c0_11, %c0_12], %12 {strides = array<i32>} : memref<256x128xf32, #tpu.memory_space<vmem>>, vector<256x128xf32>,
    } else {
    }
    %c0 = arith.constant 0 : index
    %c0_1 = arith.constant 0 : index
    %3 = vector.load %arg7[%c0, %c0_1] : memref<256x128xf32, #tpu.memory_space<vmem>>, vector<256x128xf32>
    %c0_2 = arith.constant 0 : index
    %c0_3 = arith.constant 0 : index
    %4 = vector.load %arg3[%c0_2, %c0_3] : memref<256x147xbf16, #tpu.memory_space<vmem>>, vector<256x147xbf16>
    %c0_4 = arith.constant 0 : index
    %c0_5 = arith.constant 0 : index
    %5 = vector.load %arg4[%c0_4, %c0_5] : memref<147x128xbf16, #tpu.memory_space<vmem>>, vector<147x128xbf16>
    %cst = arith.constant dense<0.000000e+00> : vector<256x128xf32>
    %6 = tpu.matmul %4, %5, %cst {dimension_numbers = #tpu.dot_dimension_numbers<[1], [0], [0], [1], [0, 0, 1, 1], [], []>} : vector<256x147xbf16>, vector<147x128xbf16>, vector<256x128xf32> -> vector<256x128xf32>
    %7 = arith.addf %3, %6 : vector<256x128xf32>
    %c0_6 = arith.constant 0 : index
    %c0_7 = arith.constant 0 : index
    %8 = vector.load %arg7[%c0_6, %c0_7] : memref<256x128xf32, #tpu.memory_space<vmem>>, vector<256x128xf32>
    tpu.vector_store %arg7[%c0_6, %c0_7], %7 {strides = array<i32>} : memref<256x128xf32, #tpu.memory_space<vmem>>, vector<256x128xf32>,
    %c0_i32_8 = arith.constant 0 : i32
    %9 = arith.cmpi eq, %arg2, %c0_i32_8 : i32
    %10 = arith.extui %9 : i1 to i32
    %c0_i32_9 = arith.constant 0 : i32
    %11 = arith.cmpi ne, %10, %c0_i32_9 : i32
    scf.if %11 {
      %c0_10 = arith.constant 0 : index
      %c0_11 = arith.constant 0 : index
      %12 = vector.load %arg7[%c0_10, %c0_11] : memref<256x128xf32, #tpu.memory_space<vmem>>, vector<256x128xf32>
      %c0_12 = arith.constant 0 : index
      %c0_13 = arith.constant 0 : index
      %13 = vector.load %arg5[%c0_12, %c0_13] : memref<1x128xf32, #tpu.memory_space<vmem>>, vector<1x128xf32>
      %14 = vector.broadcast %13 : vector<1x128xf32> to vector<256x128xf32>
      %15 = arith.addf %12, %14 : vector<256x128xf32>
      %cst_14 = arith.constant 0.000000e+00 : f32
      %16 = vector.broadcast %cst_14 : f32 to vector<256x128xf32>
      %17 = arith.maximumf %15, %16 : vector<256x128xf32>
      %18 = arith.truncf %17 : vector<256x128xf32> to vector<256x128xbf16>
      %c0_15 = arith.constant 0 : index
      %c0_16 = arith.constant 0 : index
      %19 = vector.load %arg6[%c0_15, %c0_16] : memref<256x128xbf16, #tpu.memory_space<vmem>>, vector<256x128xbf16>
      tpu.vector_store %arg6[%c0_15, %c0_16], %18 {strides = array<i32>} : memref<256x128xbf16, #tpu.memory_space<vmem>>, vector<256x128xbf16>,
    } else {
    }
    return
  }
  func.func @transform_0(%arg0: i32, %arg1: i32, %arg2: i32) -> (i32, i32) {
    %c0_i32 = arith.constant 0 : i32
    return %arg0, %arg2 : i32, i32
  }
  func.func @transform_1(%arg0: i32, %arg1: i32, %arg2: i32) -> (i32, i32) {
    %c0_i32 = arith.constant 0 : i32
    return %arg2, %arg1 : i32, i32
  }
  func.func @transform_2(%arg0: i32, %arg1: i32, %arg2: i32) -> (i32, i32) {
    %c0_i32 = arith.constant 0 : i32
    %c0_i32_0 = arith.constant 0 : i32
    return %c0_i32, %arg1 : i32, i32
  }
  func.func @transform_3(%arg0: i32, %arg1: i32, %arg2: i32) -> (i32, i32) {
    %c0_i32 = arith.constant 0 : i32
    return %arg0, %arg1 : i32, i32
  }
}

</mosaic_0001>

<llo_original>
// kernel: conv_im2col.1
$region0: #{conv_im2col.1}
  #allocation0 [shape = 'u32[]', space=smem, size = 0x4, offset = 0x4, fixed_abs, tag = 'smem constant byte address 0x4 - core index']
  #allocation1 [shape = 'u32[72,128]{1,0:T(1,128)}', space=vmem, size = 0x9000, scoped, tag = 'internal scratch']
  #allocation2 [shape = 'f32[256,128]{1,0:T(8,128)}', space=vmem, size = 0x20000, scoped, tag = 'scratch operand']
  %s0 = inlined_call_operand.vmem [shape: bf16[512,147], index: 0, kind: input, shape index: {}]
  %s1 = inlined_call_operand.vmem [shape: bf16[147,128], index: 1, kind: input, shape index: {}]
  %s2 = inlined_call_operand.vmem [shape: f32[1,128], index: 2, kind: input, shape index: {}]
  %s3 = inlined_call_operand.hbm [shape: bf16[512,128], index: 3, kind: output, shape index: {}]
  %s4 = sld [smem:[#allocation0]]
  $region53: #{conv_im2col.1} parent=0
    _
  %s6 = ssub.s32 1, %s4
  %s7 = scalar_select 0, %s6, %s4
  $region1: #{conv_im2col.1} parent=0
    #allocation3 [shape = 'u8[131072]{0}', space=vmem, size = 0x20000, scoped, tag = 'output window, operand 0']
    #allocation4 [shape = 's32[2]{0}', space=sflag, size = 0x8, scoped, tag = 'scoped memory for conv_im2col.1']
    %8 = vsyncpa [#allocation4], 0
    %s9 = scalar_lea.sflag [#allocation4], 1
    %10 = vsyncpa %s9, 0
    loop: start=0, step=1, limit=4
    $region2: #{conv_im2col.1} parent=1 // loop_pre_header
      _
    $region3: #{conv_im2col.1} parent=1 // loop_header
      %s12 = sphi 0, %s16
      %p13 = scmp.ge.s32.totalorder %s12, 4
      %s19 = sphi 0, %s38
      %s20 = sphi 0, %s34
      %s21 = sphi 0, %s30
      %s22 = sphi 0, %s19
      %s23 = sphi 0, %s20
      %s24 = sphi 0, %s21
      %s25 = sphi 0, %s22
      %s26 = sphi 0, %s23
      %s27 = sphi 0, %s24
      %s43 = sphi 0, %s45
      %s46 = sphi 0, %s43
      %s47 = sphi 0, %s46
      %s63 = sphi 0, %s47
      %s71 = sphi 0, %s73
      %s74 = sphi 0, %s71
      %s75 = sphi 0, %s74
      %s91 = sphi 0, %s75
      %s97 = sphi 0, %s99
      %s100 = sphi 0, %s97
      %s101 = sphi 0, %s100
      %s117 = sphi 0, %s101
      %s125 = sphi 0, %s127
      %s128 = sphi 0, %s125
      %s129 = sphi 0, %s128
      %s145 = sphi 0, %s129
    $region4: #{conv_im2col.1} parent=1 // loop_header_branch
      %15 = sbr.rel (%p13) target = $region8
    $region5: #{conv_im2col.1} parent=1 // loop_body
      %s17 = ssub.s32 %s12, 1
      %s18 = ssub.s32 %s12, 2
      %s28 = sadd.s32 1, %s21
      %p29 = scmp.ge.s32.totalorder %s28, 1
      %s30 = scalar_select %p29, 0, %s28
      %s31 = sadd.s32 1, %s20
      %s32 = scalar_select %p29, %s31, %s20
      %p33 = scmp.ge.s32.totalorder %s32, 1
      %s34 = scalar_select %p33, 0, %s32
      %s35 = sadd.s32 1, %s19
      %s36 = scalar_select %p33, %s35, %s19
      %p37 = scmp.ge.s32.totalorder %s36, 2
      %s38 = scalar_select %p37, 0, %s36
      %s39 = ssub.s32 %s19, %s38
      %s40 = ssub.s32 %s21, %s30
      %s41 = sor.u32 %s39, %s40
      %p42 = scmp.eq.s32.totalorder %s41, 0
      %s44 = sadd.s32 %s43, 1
      %s45 = scalar_select %p42, %s43, %s44
      %p48 = pneg %p42
      %p49 = scmp.eq.s32.totalorder %s12, 1
      %p50 = por %p48, %p49
      %p51 = scmp.ne.s32.totalorder %s43, %s46
      %p52 = scmp.eq.s32.totalorder %s12, 0
      %p53 = por %p51, %p52
      %p54 = scmp.ne.s32.totalorder %s43, %s46
      %p55 = scmp.eq.s32.totalorder %s17, 1
      %p56 = por %p54, %p55
      %p57 = scmp.ne.s32.totalorder %s46, %s47
      %p58 = scmp.eq.s32.totalorder %s17, 0
      %p59 = por %p57, %p58
      %p60 = scmp.ne.s32.totalorder %s46, %s47
      %p61 = scmp.eq.s32.totalorder %s18, 1
      %p62 = por %p60, %p61
      %p64 = scmp.ne.s32.totalorder %s47, %s63
      %p65 = scmp.eq.s32.totalorder %s18, 0
      %p66 = por %p64, %p65
      %s67 = ssub.s32 %s21, %s30
      %s68 = ssub.s32 %s20, %s34
      %s69 = sor.u32 %s67, %s68
      %p70 = scmp.eq.s32.totalorder %s69, 0
      %s72 = sadd.s32 %s71, 1
      %s73 = scalar_select %p70, %s71, %s72
      %p76 = pneg %p70
      %p77 = scmp.eq.s32.totalorder %s12, 1
      %p78 = por %p76, %p77
      %p79 = scmp.ne.s32.totalorder %s71, %s74
      %p80 = scmp.eq.s32.totalorder %s12, 0
      %p81 = por %p79, %p80
      %p82 = scmp.ne.s32.totalorder %s71, %s74
      %p83 = scmp.eq.s32.totalorder %s17, 1
      %p84 = por %p82, %p83
      %p85 = scmp.ne.s32.totalorder %s74, %s75
      %p86 = scmp.eq.s32.totalorder %s17, 0
      %p87 = por %p85, %p86
      %p88 = scmp.ne.s32.totalorder %s74, %s75
      %p89 = scmp.eq.s32.totalorder %s18, 1
      %p90 = por %p88, %p89
      %p92 = scmp.ne.s32.totalorder %s75, %s91
      %p93 = scmp.eq.s32.totalorder %s18, 0
      %p94 = por %p92, %p93
      %s95 = ssub.s32 %s20, %s34
      %p96 = scmp.eq.s32.totalorder %s95, 0
      %s98 = sadd.s32 %s97, 1
      %s99 = scalar_select %p96, %s97, %s98
      %p102 = pneg %p96
      %p103 = scmp.eq.s32.totalorder %s12, 1
      %p104 = por %p102, %p103
      %p105 = scmp.ne.s32.totalorder %s97, %s100
      %p106 = scmp.eq.s32.totalorder %s12, 0
      %p107 = por %p105, %p106
      %p108 = scmp.ne.s32.totalorder %s97, %s100
      %p109 = scmp.eq.s32.totalorder %s17, 1
      %p110 = por %p108, %p109
      %p111 = scmp.ne.s32.totalorder %s100, %s101
      %p112 = scmp.eq.s32.totalorder %s17, 0
      %p113 = por %p111, %p112
      %p114 = scmp.ne.s32.totalorder %s100, %s101
      %p115 = scmp.eq.s32.totalorder %s18, 1
      %p116 = por %p114, %p115
      %p118 = scmp.ne.s32.totalorder %s101, %s117
      %p119 = scmp.eq.s32.totalorder %s18, 0
      %p120 = por %p118, %p119
      %s121 = ssub.s32 %s19, %s38
      %s122 = ssub.s32 %s20, %s34
      %s123 = sor.u32 %s121, %s122
      %p124 = scmp.eq.s32.totalorder %s123, 0
      %s126 = sadd.s32 %s125, 1
      %s127 = scalar_select %p124, %s125, %s126
      %p130 = pneg %p124
      %p131 = scmp.eq.s32.totalorder %s12, 1
      %p132 = por %p130, %p131
      %p133 = scmp.ne.s32.totalorder %s125, %s128
      %p134 = scmp.eq.s32.totalorder %s12, 0
      %p135 = por %p133, %p134
      %p136 = scmp.ne.s32.totalorder %s125, %s128
      %p137 = scmp.eq.s32.totalorder %s17, 1
      %p138 = por %p136, %p137
      %p139 = scmp.ne.s32.totalorder %s128, %s129
      %p140 = scmp.eq.s32.totalorder %s17, 0
      %p141 = por %p139, %p140
      %p142 = scmp.ne.s32.totalorder %s128, %s129
      %p143 = scmp.eq.s32.totalorder %s18, 1
      %p144 = por %p142, %p143
      %p146 = scmp.ne.s32.totalorder %s129, %s145
      %p147 = scmp.eq.s32.totalorder %s18, 0
      %p148 = por %p146, %p147
      %p149 = scmp.le.s32.totalorder 1, %s12
      %p150 = scmp.lt.s32.totalorder %s12, 3
      %p151 = pnand %p149, %p150
      %p152 = pneg %p151
      // Predicated region
      $region9: #{conv_im2col.1} parent=5 // pred_check
        _
      $region10: #{conv_im2col.1} parent=5 // pred_check_branch
        %154 = sbr.rel (%p151) target = $region12
      $region11: #{conv_im2col.1} parent=5 // pred_region
        %s155 = ssub.s32 %s12, 1
        // Predicated region
        $region13: #{conv_im2col.1} parent=11 // pred_check
          %p156 = pneg %p87
        $region14: #{conv_im2col.1} parent=11 // pred_check_branch
          %158 = sbr.rel (%p156) target = $region16
        $region15: #{conv_im2col.1} parent=11 // pred_region
          %s159 = smul.u32 19, %s24
          %p160 = scmp.lt.s32.totalorder %s159, 18
          %s161 = scalar_select %p160, %s159, 18
          %p162 = scmp.lt.s32.totalorder %s23, 0
          %s163 = scalar_select %p162, %s23, 0
          %s164 = sadd.s32 %s163, %s161
          %s165 = smul.addr %s164, 4
          %s166 = scalar_lea.vmem %s1, %s165
          %s167 = smul.u32 19, %s24
        $region16: #{conv_im2col.1} parent=11 // pred_fallthru
          _
        // Predicated region
        $region17: #{conv_im2col.1} parent=11 // pred_check
          %p168 = pneg %p113
        $region18: #{conv_im2col.1} parent=11 // pred_check_branch
          %170 = sbr.rel (%p168) target = $region20
        $region19: #{conv_im2col.1} parent=11 // pred_region
          %p171 = scmp.lt.s32.totalorder %s23, 0
          %s172 = scalar_select %p171, %s23, 0
          %s173 = scalar_lea.vmem %s2, %s172
        $region20: #{conv_im2col.1} parent=11 // pred_fallthru
          _
      $region12: #{conv_im2col.1} parent=5 // pred_fallthru
        _
      %p174 = scmp.lt.s32.totalorder %s12, 2
      // Predicated region
      $region21: #{conv_im2col.1} parent=5 // pred_check
        %p175 = pneg %p174
      $region22: #{conv_im2col.1} parent=5 // pred_check_branch
        %177 = sbr.rel (%p175) target = $region24
      $region23: #{conv_im2col.1} parent=5 // pred_region
        // Predicated region
        $region25: #{conv_im2col.1} parent=23 // pred_check
          %p178 = pneg %p53
        $region26: #{conv_im2col.1} parent=23 // pred_check_branch
          %180 = sbr.rel (%p178) target = $region28
        $region27: #{conv_im2col.1} parent=23 // pred_region
          %s181 = smul.u32 32, %s19
          %s182 = smul.u32 2, %s21
          %p183 = scmp.lt.s32.totalorder %s181, 63
          %s184 = scalar_select %p183, %s181, 63
          %p185 = scmp.lt.s32.totalorder %s182, 1
          %s186 = scalar_select %p185, %s182, 1
          %s187 = smul.addr %s184, 2
          %s188 = sadd.s32 %s186, %s187
          %s189 = smul.addr %s188, 4
          %s190 = scalar_lea.vmem %s0, %s189
          %s191 = smul.u32 32, %s19
          %s192 = smul.u32 2, %s21
        $region28: #{conv_im2col.1} parent=23 // pred_fallthru
          _
      $region24: #{conv_im2col.1} parent=5 // pred_fallthru
        _
      %p193 = scmp.le.s32.totalorder 1, %s12
      %p194 = scmp.lt.s32.totalorder %s12, 3
      %p195 = pnand %p193, %p194
      %p196 = pneg %p195
      // Predicated region
      $region29: #{conv_im2col.1} parent=5 // pred_check
        _
      $region30: #{conv_im2col.1} parent=5 // pred_check_branch
        %198 = sbr.rel (%p195) target = $region32
      $region31: #{conv_im2col.1} parent=5 // pred_region
        %s199 = ssub.s32 %s12, 1
        %s200 = smul.u32 32, %s22
        %s201 = smul.u32 2, %s24
        %p202 = scmp.lt.s32.totalorder %s200, 63
        %s203 = scalar_select %p202, %s200, 63
        %p204 = scmp.lt.s32.totalorder %s201, 1
        %s205 = scalar_select %p204, %s201, 1
        %s206 = smul.addr %s203, 2
        %s207 = sadd.s32 %s205, %s206
        %s208 = smul.addr %s207, 4
        %s209 = scalar_lea.vmem %s0, %s208
        %p210 = pneg %p59
        %p211 = pneg %p56
        %s212 = smul.u32 19, %s24
        %p213 = scmp.lt.s32.totalorder %s212, 18
        %s214 = scalar_select %p213, %s212, 18
        %p215 = scmp.lt.s32.totalorder %s23, 0
        %s216 = scalar_select %p215, %s23, 0
        %s217 = sadd.s32 %s216, %s214
        %s218 = smul.addr %s217, 4
        %s219 = scalar_lea.vmem %s1, %s218
        %p220 = pneg %p87
        %p221 = pneg %p84
        %p222 = scmp.lt.s32.totalorder %s23, 0
        %s223 = scalar_select %p222, %s23, 0
        %s224 = scalar_lea.vmem %s2, %s223
        %p225 = pneg %p113
        %p226 = pneg %p110
        %p227 = pneg %p141
        %p228 = pneg %p138
        %s229 = sand.u32 %s128, 1
        %s230 = scalar_lea.sflag [#allocation4], %s229
        %s231 = sand.u32 %s128, 1
        %s232 = smul.addr %s231, 128
        %s233 = scalar_lea.vmem [#allocation3], %s232
        %s234 = smul.u32 32, %s22
        %s235 = smul.u32 2, %s24
        %p236 = scmp.lt.s32.totalorder %s234, 63
        %s237 = scalar_select %p236, %s234, 63
        %p238 = scmp.lt.s32.totalorder %s235, 1
        %s239 = scalar_select %p238, %s235, 1
        %s240 = smul.addr %s237, 2
        %s241 = sadd.s32 %s239, %s240
        %s242 = smul.addr %s241, 4
        %s243 = scalar_lea.vmem %s0, %s242
        %s244 = smul.u32 32, %s22
        %s245 = smul.u32 2, %s24
        %s246 = smul.u32 19, %s24
        %p247 = scmp.lt.s32.totalorder %s246, 18
        %s248 = scalar_select %p247, %s246, 18
        %p249 = scmp.lt.s32.totalorder %s23, 0
        %s250 = scalar_select %p249, %s23, 0
        %s251 = sadd.s32 %s250, %s248
        %s252 = smul.addr %s251, 4
        %s253 = scalar_lea.vmem %s1, %s252
        %s254 = smul.u32 19, %s24
        %p255 = scmp.lt.s32.totalorder %s23, 0
        %s256 = scalar_select %p255, %s23, 0
        %s257 = scalar_lea.vmem %s2, %s256
        %s258 = smul.u32 32, %s22
        %p260 = scmp.eq.s32.totalorder %s24, 0
        // Predicated region
        $region33: #{conv_im2col.1} parent=31 // pred_check
          %p261 = pneg %p260
        $region34: #{conv_im2col.1} parent=31 // pred_check_branch
          %263 = sbr.rel (%p261) target = $region36
        $region35: #{conv_im2col.1} parent=31 // pred_region
          %264 = vst [vmem:[#allocation2] sm:$0xff] 0.0
          %265 = vst [vmem:[#allocation2 + $0x8] sm:$0xff] 0.0
          %266 = vst [vmem:[#allocation2 + $0x10] sm:$0xff] 0.0
          %267 = vst [vmem:[#allocation2 + $0x18] sm:$0xff] 0.0
          %268 = vst [vmem:[#allocation2 + $0x20] sm:$0xff] 0.0
          %269 = vst [vmem:[#allocation2 + $0x28] sm:$0xff] 0.0
          %270 = vst [vmem:[#allocation2 + $0x30] sm:$0xff] 0.0
          %271 = vst [vmem:[#allocation2 + $0x38] sm:$0xff] 0.0
          %272 = vst [vmem:[#allocation2 + $0x40] sm:$0xff] 0.0
          %273 = vst [vmem:[#allocation2 + $0x48] sm:$0xff] 0.0
          %274 = vst [vmem:[#allocation2 + $0x50] sm:$0xff] 0.0
          %275 = vst [vmem:[#allocation2 + $0x58] sm:$0xff] 0.0
          %276 = vst [vmem:[#allocation2 + $0x60] sm:$0xff] 0.0
          %277 = vst [vmem:[#allocation2 + $0x68] sm:$0xff] 0.0
          %278 = vst [vmem:[#allocation2 + $0x70] sm:$0xff] 0.0
          %279 = vst [vmem:[#allocation2 + $0x78] sm:$0xff] 0.0
          %280 = vst [vmem:[#allocation2 + $0x80] sm:$0xff] 0.0
          %281 = vst [vmem:[#allocation2 + $0x88] sm:$0xff] 0.0
          %282 = vst [vmem:[#allocation2 + $0x90] sm:$0xff] 0.0
          %283 = vst [vmem:[#allocation2 + $0x98] sm:$0xff] 0.0
          %284 = vst [vmem:[#allocation2 + $0xa0] sm:$0xff] 0.0
          %285 = vst [vmem:[#allocation2 + $0xa8] sm:$0xff] 0.0
          %286 = vst [vmem:[#allocation2 + $0xb0] sm:$0xff] 0.0
          %287 = vst [vmem:[#allocation2 + $0xb8] sm:$0xff] 0.0
          %288 = vst [vmem:[#allocation2 + $0xc0] sm:$0xff] 0.0
          %289 = vst [vmem:[#allocation2 + $0xc8] sm:$0xff] 0.0
          %290 = vst [vmem:[#allocation2 + $0xd0] sm:$0xff] 0.0
          %291 = vst [vmem:[#allocation2 + $0xd8] sm:$0xff] 0.0
          %292 = vst [vmem:[#allocation2 + $0xe0] sm:$0xff] 0.0
          %293 = vst [vmem:[#allocation2 + $0xe8] sm:$0xff] 0.0
          %294 = vst [vmem:[#allocation2 + $0xf0] sm:$0xff] 0.0
          %295 = vst [vmem:[#allocation2 + $0xf8] sm:$0xff] 0.0
        $region36: #{conv_im2col.1} parent=31 // pred_fallthru
          _
        %v296 = vld [vmem:[#allocation2] sm:$0xff]
        %v297 = vld [vmem:[#allocation2 + $0x8] sm:$0xff]
        %v298 = vld [vmem:[#allocation2 + $0x10] sm:$0xff]
        %v299 = vld [vmem:[#allocation2 + $0x18] sm:$0xff]
        %v300 = vld [vmem:[#allocation2 + $0x20] sm:$0xff]
        %v301 = vld [vmem:[#allocation2 + $0x28] sm:$0xff]
        %v302 = vld [vmem:[#allocation2 + $0x30] sm:$0xff]
        %v303 = vld [vmem:[#allocation2 + $0x38] sm:$0xff]
        %v304 = vld [vmem:[#allocation2 + $0x40] sm:$0xff]
        %v305 = vld [vmem:[#allocation2 + $0x48] sm:$0xff]
        %v306 = vld [vmem:[#allocation2 + $0x50] sm:$0xff]
        %v307 = vld [vmem:[#allocation2 + $0x58] sm:$0xff]
        %v308 = vld [vmem:[#allocation2 + $0x60] sm:$0xff]
        %v309 = vld [vmem:[#allocation2 + $0x68] sm:$0xff]
        %v310 = vld [vmem:[#allocation2 + $0x70] sm:$0xff]
        %v311 = vld [vmem:[#allocation2 + $0x78] sm:$0xff]
        %v312 = vld [vmem:[#allocation2 + $0x80] sm:$0xff]
        %v313 = vld [vmem:[#allocation2 + $0x88] sm:$0xff]
        %v314 = vld [vmem:[#allocation2 + $0x90] sm:$0xff]
        %v315 = vld [vmem:[#allocation2 + $0x98] sm:$0xff]
        %v316 = vld [vmem:[#allocation2 + $0xa0] sm:$0xff]
        %v317 = vld [vmem:[#allocation2 + $0xa8] sm:$0xff]
        %v318 = vld [vmem:[#allocation2 + $0xb0] sm:$0xff]
        %v319 = vld [vmem:[#allocation2 + $0xb8] sm:$0xff]
        %v320 = vld [vmem:[#allocation2 + $0xc0] sm:$0xff]
        %v321 = vld [vmem:[#allocation2 + $0xc8] sm:$0xff]
        %v322 = vld [vmem:[#allocation2 + $0xd0] sm:$0xff]
        %v323 = vld [vmem:[#allocation2 + $0xd8] sm:$0xff]
        %v324 = vld [vmem:[#allocation2 + $0xe0] sm:$0xff]
        %v325 = vld [vmem:[#allocation2 + $0xe8] sm:$0xff]
        %v326 = vld [vmem:[#allocation2 + $0xf0] sm:$0xff]
        %v327 = vld [vmem:[#allocation2 + $0xf8] sm:$0xff]
        %v328 = vld [vmem:[%s243] sm:$0xff]
        %v329 = vld [vmem:[%s243 + $0x8] sm:$0xff]
        %v330 = vld [vmem:[%s243 + $0x10] sm:$0xff]
        %v331 = vld [vmem:[%s243 + $0x18] sm:$0xff]
        %v332 = vld [vmem:[%s243 + $0x20] sm:$0xff]
        %v333 = vld [vmem:[%s243 + $0x28] sm:$0xff]
        %v334 = vld [vmem:[%s243 + $0x30] sm:$0xff]
        %v335 = vld [vmem:[%s243 + $0x38] sm:$0xff]
        %v336 = vld [vmem:[%s243 + $0x40] sm:$0xff]
        %v337 = vld [vmem:[%s243 + $0x48] sm:$0xff]
        %v338 = vld [vmem:[%s243 + $0x50] sm:$0xff]
        %v339 = vld [vmem:[%s243 + $0x58] sm:$0xff]
        %v340 = vld [vmem:[%s243 + $0x60] sm:$0xff]
        %v341 = vld [vmem:[%s243 + $0x68] sm:$0xff]
        %v342 = vld [vmem:[%s243 + $0x70] sm:$0xff]
        %v343 = vld [vmem:[%s243 + $0x78] sm:$0xff]
        %v344 = vld [vmem:[%s243 + $0x80] sm:$0xff]
        %v345 = vld [vmem:[%s243 + $0x88] sm:$0xff]
        %v346 = vld [vmem:[%s243 + $0x90] sm:$0xff]
        %v347 = vld [vmem:[%s243 + $0x98] sm:$0xff]
        %v348 = vld [vmem:[%s243 + $0xa0] sm:$0xff]
        %v349 = vld [vmem:[%s243 + $0xa8] sm:$0xff]
        %v350 = vld [vmem:[%s243 + $0xb0] sm:$0xff]
        %v351 = vld [vmem:[%s243 + $0xb8] sm:$0xff]
        %v352 = vld [vmem:[%s243 + $0xc0] sm:$0xff]
        %v353 = vld [vmem:[%s243 + $0xc8] sm:$0xff]
        %v354 = vld [vmem:[%s243 + $0xd0] sm:$0xff]
        %v355 = vld [vmem:[%s243 + $0xd8] sm:$0xff]
        %v356 = vld [vmem:[%s243 + $0xe0] sm:$0xff]
        %v357 = vld [vmem:[%s243 + $0xe8] sm:$0xff]
        %v358 = vld [vmem:[%s243 + $0xf0] sm:$0xff]
        %v359 = vld [vmem:[%s243 + $0xf8] sm:$0xff]
        %v360 = vld [vmem:[%s253] sm:$0xf]
        %v361 = vld [vmem:[%s253 + $0x4] sm:$0xf]
        %v362 = vld [vmem:[%s253 + $0x8] sm:$0xf]
        %v363 = vld [vmem:[%s253 + $0xc] sm:$0xf]
        %v364 = vld [vmem:[%s253 + $0x10] sm:$0xf]
        %v365 = vld [vmem:[%s253 + $0x14] sm:$0xf]
        %v366 = vld [vmem:[%s253 + $0x18] sm:$0xf]
        %v367 = vld [vmem:[%s253 + $0x1c] sm:$0xf]
        %v368 = vld [vmem:[%s253 + $0x20] sm:$0xf]
        %v369 = vld [vmem:[%s253 + $0x24] sm:$0xf]
        %v370 = vld [vmem:[%s253 + $0x28] sm:$0xf]
        %v371 = vld [vmem:[%s253 + $0x2c] sm:$0xf]
        %v372 = vld [vmem:[%s253 + $0x30] sm:$0xf]
        %v373 = vld [vmem:[%s253 + $0x34] sm:$0xf]
        %v374 = vld [vmem:[%s253 + $0x38] sm:$0xf]
        %v375 = vld [vmem:[%s253 + $0x3c] sm:$0xf]
        %v376 = vld [vmem:[%s253 + $0x40] sm:$0xf]
        %v377 = vld [vmem:[%s253 + $0x44] sm:$0xf]
        %v378 = vld [vmem:[%s253 + $0x48] sm:$0x3]
        %v411 = vunpack.c.l.b16 %v328
        %v412 = vunpack.c.h.b16 %v328
        %v413 = vunpack.c.l.b16 %v329
        %v414 = vunpack.c.h.b16 %v329
        %v415 = vunpack.c.l.b16 %v330
        %v416 = vunpack.c.h.b16 %v330
        %v417 = vunpack.c.l.b16 %v331
        %v418 = vunpack.c.h.b16 %v331
        %v419 = vunpack.c.l.b16 %v332
        %v420 = vunpack.c.h.b16 %v332
        %v421 = vunpack.c.l.b16 %v333
        %v422 = vunpack.c.h.b16 %v333
        %v423 = vunpack.c.l.b16 %v334
        %v424 = vunpack.c.h.b16 %v334
        %v425 = vunpack.c.l.b16 %v335
        %v426 = vunpack.c.h.b16 %v335
        %v427 = vunpack.c.l.b16 %v336
        %v428 = vunpack.c.h.b16 %v336
        %v429 = vunpack.c.l.b16 %v337
        %v430 = vunpack.c.h.b16 %v337
        %v431 = vunpack.c.l.b16 %v338
        %v432 = vunpack.c.h.b16 %v338
        %v433 = vunpack.c.l.b16 %v339
        %v434 = vunpack.c.h.b16 %v339
        %v435 = vunpack.c.l.b16 %v340
        %v436 = vunpack.c.h.b16 %v340
        %v437 = vunpack.c.l.b16 %v341
        %v438 = vunpack.c.h.b16 %v341
        %v439 = vunpack.c.l.b16 %v342
        %v440 = vunpack.c.h.b16 %v342
        %v441 = vunpack.c.l.b16 %v343
        %v442 = vunpack.c.h.b16 %v343
        %v443 = vunpack.c.l.b16 %v344
        %v444 = vunpack.c.h.b16 %v344
        %v445 = vunpack.c.l.b16 %v345
        %v446 = vunpack.c.h.b16 %v345
        %v447 = vunpack.c.l.b16 %v346
        %v448 = vunpack.c.h.b16 %v346
        %v449 = vunpack.c.l.b16 %v347
        %v450 = vunpack.c.h.b16 %v347
        %v451 = vunpack.c.l.b16 %v348
        %v452 = vunpack.c.h.b16 %v348
        %v453 = vunpack.c.l.b16 %v349
        %v454 = vunpack.c.h.b16 %v349
        %v455 = vunpack.c.l.b16 %v350
        %v456 = vunpack.c.h.b16 %v350
        %v457 = vunpack.c.l.b16 %v351
        %v458 = vunpack.c.h.b16 %v351
        %v459 = vunpack.c.l.b16 %v352
        %v460 = vunpack.c.h.b16 %v352
        %v461 = vunpack.c.l.b16 %v353
        %v462 = vunpack.c.h.b16 %v353
        %v463 = vunpack.c.l.b16 %v354
        %v464 = vunpack.c.h.b16 %v354
        %v465 = vunpack.c.l.b16 %v355
        %v466 = vunpack.c.h.b16 %v355
        %v467 = vunpack.c.l.b16 %v356
        %v468 = vunpack.c.h.b16 %v356
        %v469 = vunpack.c.l.b16 %v357
        %v470 = vunpack.c.h.b16 %v357
        %v471 = vunpack.c.l.b16 %v358
        %v472 = vunpack.c.h.b16 %v358
        %v473 = vunpack.c.l.b16 %v359
        %v474 = vunpack.c.h.b16 %v359
        %v475 = vpack.c.b16 %v413, %v411
        %v476 = vpack.c.b16 %v414, %v412
        %v477 = vpack.c.b16 %v417, %v415
        %v478 = vpack.c.b16 %v418, %v416
        %v479 = vpack.c.b16 %v421, %v419
        %v480 = vpack.c.b16 %v422, %v420
        %v481 = vpack.c.b16 %v425, %v423
        %v482 = vpack.c.b16 %v426, %v424
        %v483 = vpack.c.b16 %v429, %v427
        %v484 = vpack.c.b16 %v430, %v428
        %v485 = vpack.c.b16 %v433, %v431
        %v486 = vpack.c.b16 %v434, %v432
        %v487 = vpack.c.b16 %v437, %v435
        %v488 = vpack.c.b16 %v438, %v436
        %v489 = vpack.c.b16 %v441, %v439
        %v490 = vpack.c.b16 %v442, %v440
        %v491 = vpack.c.b16 %v445, %v443
        %v492 = vpack.c.b16 %v446, %v444
        %v493 = vpack.c.b16 %v449, %v447
        %v494 = vpack.c.b16 %v450, %v448
        %v495 = vpack.c.b16 %v453, %v451
        %v496 = vpack.c.b16 %v454, %v452
        %v497 = vpack.c.b16 %v457, %v455
        %v498 = vpack.c.b16 %v458, %v456
        %v499 = vpack.c.b16 %v461, %v459
        %v500 = vpack.c.b16 %v462, %v460
        %v501 = vpack.c.b16 %v465, %v463
        %v502 = vpack.c.b16 %v466, %v464
        %v503 = vpack.c.b16 %v469, %v467
        %v504 = vpack.c.b16 %v470, %v468
        %v505 = vpack.c.b16 %v473, %v471
        %v506 = vpack.c.b16 %v474, %v472
        %v542 = vunpack.c.l.b16 %v360
        %v543 = vunpack.c.l.b16 %v361
        %v544 = vunpack.c.l.b16 %v362
        %v545 = vunpack.c.l.b16 %v363
        %v546 = vunpack.c.l.b16 %v364
        %v547 = vunpack.c.l.b16 %v365
        %v548 = vunpack.c.l.b16 %v366
        %v549 = vunpack.c.l.b16 %v367
        %v550 = vunpack.c.l.b16 %v368
        %v551 = vunpack.c.l.b16 %v369
        %v552 = vunpack.c.l.b16 %v370
        %v553 = vunpack.c.l.b16 %v371
        %v554 = vunpack.c.l.b16 %v372
        %v555 = vunpack.c.l.b16 %v373
        %v556 = vunpack.c.l.b16 %v374
        %v557 = vunpack.c.l.b16 %v375
        %v558 = vunpack.c.l.b16 %v376
        %v559 = vunpack.c.l.b16 %v377
        %v560 = vunpack.c.l.b16 %v378
        %v561 = vpack.c.b16 %v543, %v542
        %v562 = vpack.c.b16 %v545, %v544
        %v563 = vpack.c.b16 %v547, %v546
        %v564 = vpack.c.b16 %v549, %v548
        %v565 = vpack.c.b16 %v551, %v550
        %v566 = vpack.c.b16 %v553, %v552
        %v567 = vpack.c.b16 %v555, %v554
        %v568 = vpack.c.b16 %v557, %v556
        %v569 = vpack.c.b16 %v559, %v558
        %v570 = vpack.c.b16 %v560, %v560
        %vm580 = vcmask 154624
        %v582 = vsel %vm580, %v476, 0
        %v585 = vsel %vm580, %v478, 0
        %v588 = vsel %vm580, %v480, 0
        %v591 = vsel %vm580, %v482, 0
        %v594 = vsel %vm580, %v484, 0
        %v597 = vsel %vm580, %v486, 0
        %v600 = vsel %vm580, %v488, 0
        %v603 = vsel %vm580, %v490, 0
        %v606 = vsel %vm580, %v492, 0
        %v609 = vsel %vm580, %v494, 0
        %v612 = vsel %vm580, %v496, 0
        %v615 = vsel %vm580, %v498, 0
        %v618 = vsel %vm580, %v500, 0
        %v621 = vsel %vm580, %v502, 0
        %v624 = vsel %vm580, %v504, 0
        %v627 = vsel %vm580, %v506, 0
        %vm629 = vcmask 1040384
        %vm630 = vcmask 1041408
        %v631 = vsel %vm629, 4294967295, 65535
        %v632 = vsel %vm630, %v631, 0
        %v634 = vand.u32 %v570, %v632
        %636 = vmatpush.bf16.msra.mxu0 %v568
        %637 = vmatpush.bf16.msra.mxu0 %v567
        %638 = vmatpush.bf16.msra.mxu0 %v566
        %639 = vmatpush.bf16.msra.mxu0 %v565
        %640 = vmatpush.bf16.msra.mxu0 %v564
        %641 = vmatpush.bf16.msra.mxu0 %v563
        %642 = vmatpush.bf16.msra.mxu0 %v562
        %643 = vmatpush.bf16.msra.mxu0 %v561
        %644 = vmatmul.bf16.gmra.mxu0 %v475
        %v645 = vpop.f32.mrf.mxu0
        %v646 = vadd.f32 0.0, %v645
        %v647 = vpop.f32.mrf.mxu0
        %v648 = vadd.f32 0.0, %v647
        %649 = vmatmul.bf16.gmra.mxu0 %v477
        %v650 = vpop.f32.mrf.mxu0
        %v651 = vadd.f32 0.0, %v650
        %v652 = vpop.f32.mrf.mxu0
        %v653 = vadd.f32 0.0, %v652
        %654 = vmatmul.bf16.gmra.mxu0 %v479
        %v655 = vpop.f32.mrf.mxu0
        %v656 = vadd.f32 0.0, %v655
        %v657 = vpop.f32.mrf.mxu0
        %v658 = vadd.f32 0.0, %v657
        %659 = vmatmul.bf16.gmra.mxu0 %v481
        %v660 = vpop.f32.mrf.mxu0
        %v661 = vadd.f32 0.0, %v660
        %v662 = vpop.f32.mrf.mxu0
        %v663 = vadd.f32 0.0, %v662
        %664 = vmatmul.bf16.gmra.mxu0 %v483
        %v665 = vpop.f32.mrf.mxu0
        %v666 = vadd.f32 0.0, %v665
        %v667 = vpop.f32.mrf.mxu0
        %v668 = vadd.f32 0.0, %v667
        %669 = vmatmul.bf16.gmra.mxu0 %v485
        %v670 = vpop.f32.mrf.mxu0
        %v671 = vadd.f32 0.0, %v670
        %v672 = vpop.f32.mrf.mxu0
        %v673 = vadd.f32 0.0, %v672
        %674 = vmatmul.bf16.gmra.mxu0 %v487
        %v675 = vpop.f32.mrf.mxu0
        %v676 = vadd.f32 0.0, %v675
        %v677 = vpop.f32.mrf.mxu0
        %v678 = vadd.f32 0.0, %v677
        %679 = vmatmul.bf16.gmra.mxu0 %v489
        %v680 = vpop.f32.mrf.mxu0
        %v681 = vadd.f32 0.0, %v680
        %v682 = vpop.f32.mrf.mxu0
        %v683 = vadd.f32 0.0, %v682
        %684 = vmatmul.bf16.gmra.mxu0 %v491
        %v685 = vpop.f32.mrf.mxu0
        %v686 = vadd.f32 0.0, %v685
        %v687 = vpop.f32.mrf.mxu0
        %v688 = vadd.f32 0.0, %v687
        %689 = vmatmul.bf16.gmra.mxu0 %v493
        %v690 = vpop.f32.mrf.mxu0
        %v691 = vadd.f32 0.0, %v690
        %v692 = vpop.f32.mrf.mxu0
        %v693 = vadd.f32 0.0, %v692
        %694 = vmatmul.bf16.gmra.mxu0 %v495
        %v695 = vpop.f32.mrf.mxu0
        %v696 = vadd.f32 0.0, %v695
        %v697 = vpop.f32.mrf.mxu0
        %v698 = vadd.f32 0.0, %v697
        %699 = vmatmul.bf16.gmra.mxu0 %v497
        %v700 = vpop.f32.mrf.mxu0
        %v701 = vadd.f32 0.0, %v700
        %v702 = vpop.f32.mrf.mxu0
        %v703 = vadd.f32 0.0, %v702
        %704 = vmatmul.bf16.gmra.mxu0 %v499
        %v705 = vpop.f32.mrf.mxu0
        %v706 = vadd.f32 0.0, %v705
        %v707 = vpop.f32.mrf.mxu0
        %v708 = vadd.f32 0.0, %v707
        %709 = vmatmul.bf16.gmra.mxu0 %v501
        %v710 = vpop.f32.mrf.mxu0
        %v711 = vadd.f32 0.0, %v710
        %v712 = vpop.f32.mrf.mxu0
        %v713 = vadd.f32 0.0, %v712
        %714 = vmatmul.bf16.gmra.mxu0 %v503
        %v715 = vpop.f32.mrf.mxu0
        %v716 = vadd.f32 0.0, %v715
        %v717 = vpop.f32.mrf.mxu0
        %v718 = vadd.f32 0.0, %v717
        %719 = vmatmul.bf16.gmra.mxu0 %v505
        %v720 = vpop.f32.mrf.mxu0
        %v721 = vadd.f32 0.0, %v720
        %v722 = vpop.f32.mrf.mxu0
        %v723 = vadd.f32 0.0, %v722
        %724 = vdwg.mxu0
        %725 = vmatpush.bf16.msra.mxu0 0
        %726 = vmatpush.bf16.msra.mxu0 0
        %727 = vmatpush.bf16.msra.mxu0 0
        %728 = vmatpush.bf16.msra.mxu0 0
        %729 = vmatpush.bf16.msra.mxu0 0
        %730 = vmatpush.bf16.msra.mxu0 0
        %731 = vmatpush.bf16.msra.mxu0 %v634
        %732 = vmatpush.bf16.msra.mxu0 %v569
        %733 = vmatmul.bf16.gmra.mxu0 %v582
        %v734 = vpop.f32.mrf.mxu0
        %v735 = vadd.f32 %v646, %v734
        %v736 = vpop.f32.mrf.mxu0
        %v737 = vadd.f32 %v648, %v736
        %738 = vmatmul.bf16.gmra.mxu0 %v585
        %v739 = vpop.f32.mrf.mxu0
        %v740 = vadd.f32 %v651, %v739
        %v741 = vpop.f32.mrf.mxu0
        %v742 = vadd.f32 %v653, %v741
        %743 = vmatmul.bf16.gmra.mxu0 %v588
        %v744 = vpop.f32.mrf.mxu0
        %v745 = vadd.f32 %v656, %v744
        %v746 = vpop.f32.mrf.mxu0
        %v747 = vadd.f32 %v658, %v746
        %748 = vmatmul.bf16.gmra.mxu0 %v591
        %v749 = vpop.f32.mrf.mxu0
        %v750 = vadd.f32 %v661, %v749
        %v751 = vpop.f32.mrf.mxu0
        %v752 = vadd.f32 %v663, %v751
        %753 = vmatmul.bf16.gmra.mxu0 %v594
        %v754 = vpop.f32.mrf.mxu0
        %v755 = vadd.f32 %v666, %v754
        %v756 = vpop.f32.mrf.mxu0
        %v757 = vadd.f32 %v668, %v756
        %758 = vmatmul.bf16.gmra.mxu0 %v597
        %v759 = vpop.f32.mrf.mxu0
        %v760 = vadd.f32 %v671, %v759
        %v761 = vpop.f32.mrf.mxu0
        %v762 = vadd.f32 %v673, %v761
        %763 = vmatmul.bf16.gmra.mxu0 %v600
        %v764 = vpop.f32.mrf.mxu0
        %v765 = vadd.f32 %v676, %v764
        %v766 = vpop.f32.mrf.mxu0
        %v767 = vadd.f32 %v678, %v766
        %768 = vmatmul.bf16.gmra.mxu0 %v603
        %v769 = vpop.f32.mrf.mxu0
        %v770 = vadd.f32 %v681, %v769
        %v771 = vpop.f32.mrf.mxu0
        %v772 = vadd.f32 %v683, %v771
        %773 = vmatmul.bf16.gmra.mxu0 %v606
        %v774 = vpop.f32.mrf.mxu0
        %v775 = vadd.f32 %v686, %v774
        %v776 = vpop.f32.mrf.mxu0
        %v777 = vadd.f32 %v688, %v776
        %778 = vmatmul.bf16.gmra.mxu0 %v609
        %v779 = vpop.f32.mrf.mxu0
        %v780 = vadd.f32 %v691, %v779
        %v781 = vpop.f32.mrf.mxu0
        %v782 = vadd.f32 %v693, %v781
        %783 = vmatmul.bf16.gmra.mxu0 %v612
        %v784 = vpop.f32.mrf.mxu0
        %v785 = vadd.f32 %v696, %v784
        %v786 = vpop.f32.mrf.mxu0
        %v787 = vadd.f32 %v698, %v786
        %788 = vmatmul.bf16.gmra.mxu0 %v615
        %v789 = vpop.f32.mrf.mxu0
        %v790 = vadd.f32 %v701, %v789
        %v791 = vpop.f32.mrf.mxu0
        %v792 = vadd.f32 %v703, %v791
        %793 = vmatmul.bf16.gmra.mxu0 %v618
        %v794 = vpop.f32.mrf.mxu0
        %v795 = vadd.f32 %v706, %v794
        %v796 = vpop.f32.mrf.mxu0
        %v797 = vadd.f32 %v708, %v796
        %798 = vmatmul.bf16.gmra.mxu0 %v621
        %v799 = vpop.f32.mrf.mxu0
        %v800 = vadd.f32 %v711, %v799
        %v801 = vpop.f32.mrf.mxu0
        %v802 = vadd.f32 %v713, %v801
        %803 = vmatmul.bf16.gmra.mxu0 %v624
        %v804 = vpop.f32.mrf.mxu0
        %v805 = vadd.f32 %v716, %v804
        %v806 = vpop.f32.mrf.mxu0
        %v807 = vadd.f32 %v718, %v806
        %808 = vmatmul.bf16.gmra.mxu0 %v627
        %v809 = vpop.f32.mrf.mxu0
        %v810 = vadd.f32 %v721, %v809
        %v811 = vpop.f32.mrf.mxu0
        %v812 = vadd.f32 %v723, %v811
        %813 = vdwg.mxu0
        %v814 = vadd.f32 %v296, %v735
        %v815 = vadd.f32 %v297, %v737
        %v816 = vadd.f32 %v298, %v740
        %v817 = vadd.f32 %v299, %v742
        %v818 = vadd.f32 %v300, %v745
        %v819 = vadd.f32 %v301, %v747
        %v820 = vadd.f32 %v302, %v750
        %v821 = vadd.f32 %v303, %v752
        %v822 = vadd.f32 %v304, %v755
        %v823 = vadd.f32 %v305, %v757
        %v824 = vadd.f32 %v306, %v760
        %v825 = vadd.f32 %v307, %v762
        %v826 = vadd.f32 %v308, %v765
        %v827 = vadd.f32 %v309, %v767
        %v828 = vadd.f32 %v310, %v770
        %v829 = vadd.f32 %v311, %v772
        %v830 = vadd.f32 %v312, %v775
        %v831 = vadd.f32 %v313, %v777
        %v832 = vadd.f32 %v314, %v780
        %v833 = vadd.f32 %v315, %v782
        %v834 = vadd.f32 %v316, %v785
        %v835 = vadd.f32 %v317, %v787
        %v836 = vadd.f32 %v318, %v790
        %v837 = vadd.f32 %v319, %v792
        %v838 = vadd.f32 %v320, %v795
        %v839 = vadd.f32 %v321, %v797
        %v840 = vadd.f32 %v322, %v800
        %v841 = vadd.f32 %v323, %v802
        %v842 = vadd.f32 %v324, %v805
        %v843 = vadd.f32 %v325, %v807
        %v844 = vadd.f32 %v326, %v810
        %v845 = vadd.f32 %v327, %v812
        %846 = vst [vmem:[#allocation2] sm:$0xff] %v814
        %847 = vst [vmem:[#allocation2 + $0x8] sm:$0xff] %v815
        %848 = vst [vmem:[#allocation2 + $0x10] sm:$0xff] %v816
        %849 = vst [vmem:[#allocation2 + $0x18] sm:$0xff] %v817
        %850 = vst [vmem:[#allocation2 + $0x20] sm:$0xff] %v818
        %851 = vst [vmem:[#allocation2 + $0x28] sm:$0xff] %v819
        %852 = vst [vmem:[#allocation2 + $0x30] sm:$0xff] %v820
        %853 = vst [vmem:[#allocation2 + $0x38] sm:$0xff] %v821
        %854 = vst [vmem:[#allocation2 + $0x40] sm:$0xff] %v822
        %855 = vst [vmem:[#allocation2 + $0x48] sm:$0xff] %v823
        %856 = vst [vmem:[#allocation2 + $0x50] sm:$0xff] %v824
        %857 = vst [vmem:[#allocation2 + $0x58] sm:$0xff] %v825
        %858 = vst [vmem:[#allocation2 + $0x60] sm:$0xff] %v826
        %859 = vst [vmem:[#allocation2 + $0x68] sm:$0xff] %v827
        %860 = vst [vmem:[#allocation2 + $0x70] sm:$0xff] %v828
        %861 = vst [vmem:[#allocation2 + $0x78] sm:$0xff] %v829
        %862 = vst [vmem:[#allocation2 + $0x80] sm:$0xff] %v830
        %863 = vst [vmem:[#allocation2 + $0x88] sm:$0xff] %v831
        %864 = vst [vmem:[#allocation2 + $0x90] sm:$0xff] %v832
        %865 = vst [vmem:[#allocation2 + $0x98] sm:$0xff] %v833
        %866 = vst [vmem:[#allocation2 + $0xa0] sm:$0xff] %v834
        %867 = vst [vmem:[#allocation2 + $0xa8] sm:$0xff] %v835
        %868 = vst [vmem:[#allocation2 + $0xb0] sm:$0xff] %v836
        %869 = vst [vmem:[#allocation2 + $0xb8] sm:$0xff] %v837
        %870 = vst [vmem:[#allocation2 + $0xc0] sm:$0xff] %v838
        %871 = vst [vmem:[#allocation2 + $0xc8] sm:$0xff] %v839
        %872 = vst [vmem:[#allocation2 + $0xd0] sm:$0xff] %v840
        %873 = vst [vmem:[#allocation2 + $0xd8] sm:$0xff] %v841
        %874 = vst [vmem:[#allocation2 + $0xe0] sm:$0xff] %v842
        %875 = vst [vmem:[#allocation2 + $0xe8] sm:$0xff] %v843
        %876 = vst [vmem:[#allocation2 + $0xf0] sm:$0xff] %v844
        %877 = vst [vmem:[#allocation2 + $0xf8] sm:$0xff] %v845
        // Predicated region
        $region37: #{conv_im2col.1} parent=31 // pred_check
          %p878 = pneg %p260
        $region38: #{conv_im2col.1} parent=31 // pred_check_branch
          %880 = sbr.rel (%p878) target = $region40
        $region39: #{conv_im2col.1} parent=31 // pred_region
          %v881 = vld [vmem:[#allocation2] sm:$0xff]
          %v882 = vld [vmem:[#allocation2 + $0x8] sm:$0xff]
          %v883 = vld [vmem:[#allocation2 + $0x10] sm:$0xff]
          %v884 = vld [vmem:[#allocation2 + $0x18] sm:$0xff]
          %v885 = vld [vmem:[#allocation2 + $0x20] sm:$0xff]
          %v886 = vld [vmem:[#allocation2 + $0x28] sm:$0xff]
          %v887 = vld [vmem:[#allocation2 + $0x30] sm:$0xff]
          %v888 = vld [vmem:[#allocation2 + $0x38] sm:$0xff]
          %v889 = vld [vmem:[#allocation2 + $0x40] sm:$0xff]
          %v890 = vld [vmem:[#allocation2 + $0x48] sm:$0xff]
          %v891 = vld [vmem:[#allocation2 + $0x50] sm:$0xff]
          %v892 = vld [vmem:[#allocation2 + $0x58] sm:$0xff]
          %v893 = vld [vmem:[#allocation2 + $0x60] sm:$0xff]
          %v894 = vld [vmem:[#allocation2 + $0x68] sm:$0xff]
          %v895 = vld [vmem:[#allocation2 + $0x70] sm:$0xff]
          %v896 = vld [vmem:[#allocation2 + $0x78] sm:$0xff]
          %v897 = vld [vmem:[#allocation2 + $0x80] sm:$0xff]
          %v898 = vld [vmem:[#allocation2 + $0x88] sm:$0xff]
          %v899 = vld [vmem:[#allocation2 + $0x90] sm:$0xff]
          %v900 = vld [vmem:[#allocation2 + $0x98] sm:$0xff]
          %v901 = vld [vmem:[#allocation2 + $0xa0] sm:$0xff]
          %v902 = vld [vmem:[#allocation2 + $0xa8] sm:$0xff]
          %v903 = vld [vmem:[#allocation2 + $0xb0] sm:$0xff]
          %v904 = vld [vmem:[#allocation2 + $0xb8] sm:$0xff]
          %v905 = vld [vmem:[#allocation2 + $0xc0] sm:$0xff]
          %v906 = vld [vmem:[#allocation2 + $0xc8] sm:$0xff]
          %v907 = vld [vmem:[#allocation2 + $0xd0] sm:$0xff]
          %v908 = vld [vmem:[#allocation2 + $0xd8] sm:$0xff]
          %v909 = vld [vmem:[#allocation2 + $0xe0] sm:$0xff]
          %v910 = vld [vmem:[#allocation2 + $0xe8] sm:$0xff]
          %v911 = vld [vmem:[#allocation2 + $0xf0] sm:$0xff]
          %v912 = vld [vmem:[#allocation2 + $0xf8] sm:$0xff]
          %v913 = vld [vmem:[%s257] sm:$0x1]
          %v915 = vperm.slane %v913, 0
          %v917 = vadd.f32 %v881, %v915
          %v918 = vadd.f32 %v882, %v915
          %v919 = vadd.f32 %v883, %v915
          %v920 = vadd.f32 %v884, %v915
          %v921 = vadd.f32 %v885, %v915
          %v922 = vadd.f32 %v886, %v915
          %v923 = vadd.f32 %v887, %v915
          %v924 = vadd.f32 %v888, %v915
          %v925 = vadd.f32 %v889, %v915
          %v926 = vadd.f32 %v890, %v915
          %v927 = vadd.f32 %v891, %v915
          %v928 = vadd.f32 %v892, %v915
          %v929 = vadd.f32 %v893, %v915
          %v930 = vadd.f32 %v894, %v915
          %v931 = vadd.f32 %v895, %v915
          %v932 = vadd.f32 %v896, %v915
          %v933 = vadd.f32 %v897, %v915
          %v934 = vadd.f32 %v898, %v915
          %v935 = vadd.f32 %v899, %v915
          %v936 = vadd.f32 %v900, %v915
          %v937 = vadd.f32 %v901, %v915
          %v938 = vadd.f32 %v902, %v915
          %v939 = vadd.f32 %v903, %v915
          %v940 = vadd.f32 %v904, %v915
          %v941 = vadd.f32 %v905, %v915
          %v942 = vadd.f32 %v906, %v915
          %v943 = vadd.f32 %v907, %v915
          %v944 = vadd.f32 %v908, %v915
          %v945 = vadd.f32 %v909, %v915
          %v946 = vadd.f32 %v910, %v915
          %v947 = vadd.f32 %v911, %v915
          %v948 = vadd.f32 %v912, %v915
          %v949 = vmax.f32 %v917, 0.0
          %v950 = vmax.f32 %v918, 0.0
          %v951 = vmax.f32 %v919, 0.0
          %v952 = vmax.f32 %v920, 0.0
          %v953 = vmax.f32 %v921, 0.0
          %v954 = vmax.f32 %v922, 0.0
          %v955 = vmax.f32 %v923, 0.0
          %v956 = vmax.f32 %v924, 0.0
          %v957 = vmax.f32 %v925, 0.0
          %v958 = vmax.f32 %v926, 0.0
          %v959 = vmax.f32 %v927, 0.0
          %v960 = vmax.f32 %v928, 0.0
          %v961 = vmax.f32 %v929, 0.0
          %v962 = vmax.f32 %v930, 0.0
          %v963 = vmax.f32 %v931, 0.0
          %v964 = vmax.f32 %v932, 0.0
          %v965 = vmax.f32 %v933, 0.0
          %v966 = vmax.f32 %v934, 0.0
          %v967 = vmax.f32 %v935, 0.0
          %v968 = vmax.f32 %v936, 0.0
          %v969 = vmax.f32 %v937, 0.0
          %v970 = vmax.f32 %v938, 0.0
          %v971 = vmax.f32 %v939, 0.0
          %v972 = vmax.f32 %v940, 0.0
          %v973 = vmax.f32 %v941, 0.0
          %v974 = vmax.f32 %v942, 0.0
          %v975 = vmax.f32 %v943, 0.0
          %v976 = vmax.f32 %v944, 0.0
          %v977 = vmax.f32 %v945, 0.0
          %v978 = vmax.f32 %v946, 0.0
          %v979 = vmax.f32 %v947, 0.0
          %v980 = vmax.f32 %v948, 0.0
          %v981 = vpack.c.bf16 %v949, %v949
          %v982 = vpack.c.bf16 %v950, %v950
          %v983 = vpack.c.bf16 %v951, %v951
          %v984 = vpack.c.bf16 %v952, %v952
          %v985 = vpack.c.bf16 %v953, %v953
          %v986 = vpack.c.bf16 %v954, %v954
          %v987 = vpack.c.bf16 %v955, %v955
          %v988 = vpack.c.bf16 %v956, %v956
          %v989 = vpack.c.bf16 %v957, %v957
          %v990 = vpack.c.bf16 %v958, %v958
          %v991 = vpack.c.bf16 %v959, %v959
          %v992 = vpack.c.bf16 %v960, %v960
          %v993 = vpack.c.bf16 %v961, %v961
          %v994 = vpack.c.bf16 %v962, %v962
          %v995 = vpack.c.bf16 %v963, %v963
          %v996 = vpack.c.bf16 %v964, %v964
          %v997 = vpack.c.bf16 %v965, %v965
          %v998 = vpack.c.bf16 %v966, %v966
          %v999 = vpack.c.bf16 %v967, %v967
          %v1000 = vpack.c.bf16 %v968, %v968
          %v1001 = vpack.c.bf16 %v969, %v969
          %v1002 = vpack.c.bf16 %v970, %v970
          %v1003 = vpack.c.bf16 %v971, %v971
          %v1004 = vpack.c.bf16 %v972, %v972
          %v1005 = vpack.c.bf16 %v973, %v973
          %v1006 = vpack.c.bf16 %v974, %v974
          %v1007 = vpack.c.bf16 %v975, %v975
          %v1008 = vpack.c.bf16 %v976, %v976
          %v1009 = vpack.c.bf16 %v977, %v977
          %v1010 = vpack.c.bf16 %v978, %v978
          %v1011 = vpack.c.bf16 %v979, %v979
          %v1012 = vpack.c.bf16 %v980, %v980
          %1013 = vst [vmem:[%s233] sm:$0xf] %v981
          %1014 = vst [vmem:[%s233 + $0x4] sm:$0xf] %v982
          %1015 = vst [vmem:[%s233 + $0x8] sm:$0xf] %v983
          %1016 = vst [vmem:[%s233 + $0xc] sm:$0xf] %v984
          %1017 = vst [vmem:[%s233 + $0x10] sm:$0xf] %v985
          %1018 = vst [vmem:[%s233 + $0x14] sm:$0xf] %v986
          %1019 = vst [vmem:[%s233 + $0x18] sm:$0xf] %v987
          %1020 = vst [vmem:[%s233 + $0x1c] sm:$0xf] %v988
          %1021 = vst [vmem:[%s233 + $0x20] sm:$0xf] %v989
          %1022 = vst [vmem:[%s233 + $0x24] sm:$0xf] %v990
          %1023 = vst [vmem:[%s233 + $0x28] sm:$0xf] %v991
          %1024 = vst [vmem:[%s233 + $0x2c] sm:$0xf] %v992
          %1025 = vst [vmem:[%s233 + $0x30] sm:$0xf] %v993
          %1026 = vst [vmem:[%s233 + $0x34] sm:$0xf] %v994
          %1027 = vst [vmem:[%s233 + $0x38] sm:$0xf] %v995
          %1028 = vst [vmem:[%s233 + $0x3c] sm:$0xf] %v996
          %1029 = vst [vmem:[%s233 + $0x40] sm:$0xf] %v997
          %1030 = vst [vmem:[%s233 + $0x44] sm:$0xf] %v998
          %1031 = vst [vmem:[%s233 + $0x48] sm:$0xf] %v999
          %1032 = vst [vmem:[%s233 + $0x4c] sm:$0xf] %v1000
          %1033 = vst [vmem:[%s233 + $0x50] sm:$0xf] %v1001
          %1034 = vst [vmem:[%s233 + $0x54] sm:$0xf] %v1002
          %1035 = vst [vmem:[%s233 + $0x58] sm:$0xf] %v1003
          %1036 = vst [vmem:[%s233 + $0x5c] sm:$0xf] %v1004
          %1037 = vst [vmem:[%s233 + $0x60] sm:$0xf] %v1005
          %1038 = vst [vmem:[%s233 + $0x64] sm:$0xf] %v1006
          %1039 = vst [vmem:[%s233 + $0x68] sm:$0xf] %v1007
          %1040 = vst [vmem:[%s233 + $0x6c] sm:$0xf] %v1008
          %1041 = vst [vmem:[%s233 + $0x70] sm:$0xf] %v1009
          %1042 = vst [vmem:[%s233 + $0x74] sm:$0xf] %v1010
          %1043 = vst [vmem:[%s233 + $0x78] sm:$0xf] %v1011
          %1044 = vst [vmem:[%s233 + $0x7c] sm:$0xf] %v1012
        $region40: #{conv_im2col.1} parent=31 // pred_fallthru
          _
        %s1045 = sand.u32 %s128, 1
        %s1046 = scalar_lea.sflag [#allocation4], %s1045
        %s1047 = sand.u32 %s128, 1
        %s1048 = smul.addr %s1047, 128
        %s1049 = scalar_lea.vmem [#allocation3], %s1048
        // Predicated region
        $region41: #{conv_im2col.1} parent=31 // pred_check
          %p1050 = pneg %p138
        $region42: #{conv_im2col.1} parent=31 // pred_check_branch
          %1052 = sbr.rel (%p1050) target = $region44
        $region43: #{conv_im2col.1} parent=31 // pred_region
          %s1053 = smul.u32 32, %s22
          %1055 = vsyncadd %s1046, 0
          %s1056 = sadd.s32 %s23, %s1053
          %s1057 = smul.addr %s1056, 4
          %s1058 = scalar_lea.hbm %s3, %s1057
          %s1059 = sshll.u32 %s1049, 4
          %s1060 = int_to_ptr.vmem [resolvable:$true] %s1059
          %s1061 = sshll.u32 %s1058, 4
          %s1062 = int_to_ptr.hbm [resolvable:$true] %s1061
          %1067 = dma.vmem_to_hbm [thread:$0]  %s1060, 2048, %s1062, %s1046, 64, 64, 4
        $region44: #{conv_im2col.1} parent=31 // pred_fallthru
          _
      $region32: #{conv_im2col.1} parent=5 // pred_fallthru
        _
      %p1068 = scmp.le.s32.totalorder 2, %s12
      // Predicated region
      $region45: #{conv_im2col.1} parent=5 // pred_check
        %p1069 = pneg %p1068
      $region46: #{conv_im2col.1} parent=5 // pred_check_branch
        %1071 = sbr.rel (%p1069) target = $region48
      $region47: #{conv_im2col.1} parent=5 // pred_region
        %s1072 = ssub.s32 %s12, 2
        // Predicated region
        $region49: #{conv_im2col.1} parent=47 // pred_check
          %p1073 = pneg %p144
        $region50: #{conv_im2col.1} parent=47 // pred_check_branch
          %1075 = sbr.rel (%p1073) target = $region52
        $region51: #{conv_im2col.1} parent=47 // pred_region
          %s1076 = sand.u32 %s129, 1
          %s1077 = scalar_lea.sflag [#allocation4], %s1076
          %s1078 = sand.u32 %s129, 1
          %s1079 = smul.addr %s1078, 128
          %s1080 = scalar_lea.vmem [#allocation3], %s1079
          %1082 = dma.done %s1077, 2048
        $region52: #{conv_im2col.1} parent=47 // pred_fallthru
          _
      $region48: #{conv_im2col.1} parent=5 // pred_fallthru
        _
    $region6: #{conv_im2col.1} parent=1 // loop_footer
      %s16 = sadd.s32 1, %s12
    $region7: #{conv_im2col.1} parent=1 // loop_footer_branch
      %11 = sbr.rel target = $region3
    $region8: #{conv_im2col.1} parent=1 // loop_exit
      _
    %1083 = vsyncpa [#allocation4], 1
    %s1084 = scalar_lea.sflag [#allocation4], 1
    %1085 = vsyncpa %s1084, 1

</llo_original>
